<compile_context>
chip_gen: v7x
topology: tpu7x:2x2x1
jax: 0.10.0
libtpu: 0.0.40
codegen_flags: <defaults>
</compile_context>

<pallas_src>
import math

import jax
import jax.numpy as jnp
from jax.experimental import pallas as pl
from jax.experimental.pallas import tpu as pltpu

HIDDEN = 100
HIDDEN_PAD = 128      # lane-dense hidden width
OUT = 3
OUT_PAD = 8           # padded fc3 width inside the kernel
NEG_BIG = -1e30       # pad value for fc3 bias lanes (exp(-1e30 - m) == 0)


def _mlp_kernel(x_ref, w1_ref, b1_ref, w2_ref, b2_ref, w3_ref, b3_ref,
                fc2r_ref, packed_ref):
    x = x_ref[...]                                # (TB, 2)
    w1 = w1_ref[...]                              # (2, 128)

    # fc1 + ReLU on the VPU: K=2 contraction as two broadcast FMAs (no MXU pass).
    h1 = x[:, 0:1] * w1[0:1, :] + x[:, 1:2] * w1[1:2, :] + b1_ref[...]
    h1 = jnp.maximum(h1, 0.0)                     # (TB, 128)

    # fc2 + ReLU on the MXU (lane-dense 128x128 tile). This is fc2_r.
    fc2r = jnp.dot(h1, w2_ref[...], preferred_element_type=jnp.float32) + b2_ref[...]
    fc2r = jnp.maximum(fc2r, 0.0)                 # (TB, 128)

    # fc3 padded to 8 lanes; pad lanes carry -1e30 via the bias padding.
    fc3 = jnp.dot(fc2r, w3_ref[...], preferred_element_type=jnp.float32) + b3_ref[...]  # (TB, 8)

    # Numerically stable log_softmax over the (padded) class axis.
    # Pad lanes are ~ -1e30: they don't affect the max and contribute exp(.) == 0.
    m = jnp.max(fc3, axis=1, keepdims=True)
    z = fc3 - m
    lse = jnp.log(jnp.sum(jnp.exp(z), axis=1, keepdims=True))
    logp = z - lse                                # (TB, 8)

    fc2r_ref[...] = fc2r
    # Pack the two tiny class-dim results into a single writeback stream.
    packed_ref[:, 0:OUT_PAD] = fc3
    packed_ref[:, OUT_PAD:2 * OUT_PAD] = logp


def _round_up(a, m):
    return ((a + m - 1) // m) * m


def _pad_params(params):
    """Pad params to lane-dense widths: hidden 100->128, out 3->8."""
    w1, b1, w2, b2, w3, b3 = params
    hp = HIDDEN_PAD - HIDDEN
    op = OUT_PAD - OUT
    w1p = jnp.pad(w1, ((0, 0), (0, hp)))                              # (2, 128)
    b1p = jnp.pad(b1, ((0, 0), (0, hp)))                              # (1, 128)
    w2p = jnp.pad(w2, ((0, hp), (0, hp)))                             # (128, 128)
    b2p = jnp.pad(b2, ((0, 0), (0, hp)))                              # (1, 128)
    w3p = jnp.pad(w3, ((0, hp), (0, op)))                             # (128, 8)
    b3p = jnp.pad(b3, ((0, 0), (0, op)), constant_values=NEG_BIG)     # (1, 8)
    return w1p, b1p, w2p, b2p, w3p, b3p


def mlp_forward(x, params, *, batch_tile=512):
    """x: (N, 2) float32. Returns (fc2_r, fc3, log_softmax) matching the torch module."""
    n, in_dim = x.shape
    assert in_dim == 2

    # Batch tiling: 512 by default (amortizes per-step pipeline overhead and
    # fills MXU rows); shrink for tiny batches so we don't over-pad. The batch
    # is zero-padded to a tile multiple and sliced back afterwards.
    bt = min(batch_tile, _round_up(n, 8))
    n_pad = _round_up(n, bt)
    grid = (n_pad // bt,)

    x_pad = jnp.pad(x, ((0, n_pad - n), (0, 0)))
    w1p, b1p, w2p, b2p, w3p, b3p = _pad_params(params)

    def fixed(shape):
        return pl.BlockSpec(shape, lambda i: (0, 0))

    in_specs = [
        pl.BlockSpec((bt, 2), lambda i: (i, 0)),   # x tile over the batch
        fixed((2, HIDDEN_PAD)),                    # w1^T (padded)
        fixed((1, HIDDEN_PAD)),                    # b1   (padded)
        fixed((HIDDEN_PAD, HIDDEN_PAD)),           # w2^T (padded)
        fixed((1, HIDDEN_PAD)),                    # b2   (padded)
        fixed((HIDDEN_PAD, OUT_PAD)),              # w3^T (padded)
        fixed((1, OUT_PAD)),                       # b3   (padded, -1e30 lanes)
    ]
    out_specs = [
        pl.BlockSpec((bt, HIDDEN_PAD), lambda i: (i, 0)),      # fc2_r (lane-dense)
        pl.BlockSpec((bt, 2 * OUT_PAD), lambda i: (i, 0)),     # packed fc3 | logp
    ]
    out_shape = [
        jax.ShapeDtypeStruct((n_pad, HIDDEN_PAD), jnp.float32),
        jax.ShapeDtypeStruct((n_pad, 2 * OUT_PAD), jnp.float32),
    ]

    fc2r_pad, packed = pl.pallas_call(
        _mlp_kernel,
        grid=grid,
        in_specs=in_specs,
        out_specs=out_specs,
        out_shape=out_shape,
        compiler_params=pltpu.CompilerParams(
            dimension_semantics=("parallel",)),
    )(x_pad, w1p, b1p, w2p, b2p, w3p, b3p)

    fc2_r = fc2r_pad[:n, :HIDDEN]
    fc3 = packed[:n, :OUT]
    y = packed[:n, OUT_PAD:OUT_PAD + OUT]
    return fc2_r, fc3, y


def init_params(key):
    """Deterministic init mimicking PyTorch Linear's U(-1/sqrt(fan_in), 1/sqrt(fan_in)).
    Weights stored already transposed to (in, out); biases as (1, out). Unpadded."""
    def linear(key, fan_in, fan_out):
        kw, kb = jax.random.split(key)
        bound = 1.0 / math.sqrt(fan_in)
        w_t = jax.random.uniform(kw, (fan_in, fan_out), jnp.float32, -bound, bound)
        b = jax.random.uniform(kb, (1, fan_out), jnp.float32, -bound, bound)
        return w_t, b

    k1, k2, k3 = jax.random.split(key, 3)
    w1, b1 = linear(k1, 2, HIDDEN)
    w2, b2 = linear(k2, HIDDEN, HIDDEN)
    w3, b3 = linear(k3, HIDDEN, OUT)
    return (w1, b1, w2, b2, w3, b3)


def _reference(x, params):
    w1, b1, w2, b2, w3, b3 = params
    h1 = jnp.maximum(x @ w1 + b1, 0.0)
    fc2r = jnp.maximum(h1 @ w2 + b2, 0.0)
    fc3 = fc2r @ w3 + b3
    logp = jax.nn.log_softmax(fc3, axis=1)
    return fc2r, fc3, logp


def _check(x, params, atol=1e-5):
    fc2_r, fc3, y = mlp_forward(x, params)
    jax.block_until_ready((fc2_r, fc3, y))
    r_fc2_r, r_fc3, r_y = _reference(x, params)
    assert fc2_r.shape == r_fc2_r.shape and fc3.shape == r_fc3.shape and y.shape == r_y.shape
    assert jnp.allclose(fc2_r, r_fc2_r, atol=atol), "fc2_r mismatch"
    assert jnp.allclose(fc3, r_fc3, atol=atol), "fc3 mismatch"
    assert jnp.allclose(y, r_y, atol=atol), "log_softmax mismatch"


if __name__ == "__main__":
    key = jax.random.PRNGKey(0)
    k_params, k_x1, k_x2 = jax.random.split(key, 3)
    params = init_params(k_params)

    # Small demo batch (batch=8, in_features=2).
    x_small = jax.random.normal(k_x1, (8, 2), dtype=jnp.float32)
    _check(x_small, params)

    # Larger batch exercising the multi-step (>=2 parallel grid steps) + padding path.
    x_big = jax.random.normal(k_x2, (1200, 2), dtype=jnp.float32)
    _check(x_big, params)

    print("KERNEL_OK")
</pallas_src>

<mosaic_0001>
module attributes {stable_mosaic.version = 11 : i64} {
  func.func @_mlp_kernel(%arg0: i32, %arg1: memref<8x2xf32, #tpu.memory_space<vmem>>, %arg2: memref<2x128xf32, #tpu.memory_space<vmem>>, %arg3: memref<1x128xf32, #tpu.memory_space<vmem>>, %arg4: memref<128x128xf32, #tpu.memory_space<vmem>>, %arg5: memref<1x128xf32, #tpu.memory_space<vmem>>, %arg6: memref<128x8xf32, #tpu.memory_space<vmem>>, %arg7: memref<1x8xf32, #tpu.memory_space<vmem>>, %arg8: memref<8x128xf32, #tpu.memory_space<vmem>>, %arg9: memref<8x16xf32, #tpu.memory_space<vmem>>) attributes {dimension_semantics = [#tpu.dimension_semantics<parallel>], iteration_bounds = array<i64: 1>, scalar_prefetch = 0 : i64, scratch_operands = 0 : i64, tpu.core_type = #tpu.core_type<tc>, window_params = [{transform_indices = @transform_0, window_bounds = array<i64: 8, 2>}, {pipeline_mode = #tpu.pipeline_mode<synchronous>, transform_indices = @transform_1, window_bounds = array<i64: 2, 128>}, {pipeline_mode = #tpu.pipeline_mode<synchronous>, transform_indices = @transform_2, window_bounds = array<i64: 1, 128>}, {pipeline_mode = #tpu.pipeline_mode<synchronous>, transform_indices = @transform_3, window_bounds = array<i64: 128, 128>}, {pipeline_mode = #tpu.pipeline_mode<synchronous>, transform_indices = @transform_4, window_bounds = array<i64: 1, 128>}, {pipeline_mode = #tpu.pipeline_mode<synchronous>, transform_indices = @transform_5, window_bounds = array<i64: 128, 8>}, {pipeline_mode = #tpu.pipeline_mode<synchronous>, transform_indices = @transform_6, window_bounds = array<i64: 1, 8>}, {transform_indices = @transform_7, window_bounds = array<i64: 8, 128>}, {transform_indices = @transform_8, window_bounds = array<i64: 8, 16>}]} {
    %c0 = arith.constant 0 : index
    %c0_0 = arith.constant 0 : index
    %0 = vector.load %arg1[%c0, %c0_0] : memref<8x2xf32, #tpu.memory_space<vmem>>, vector<8x2xf32>
    %c0_1 = arith.constant 0 : index
    %c0_2 = arith.constant 0 : index
    %1 = vector.load %arg2[%c0_1, %c0_2] : memref<2x128xf32, #tpu.memory_space<vmem>>, vector<2x128xf32>
    %2 = vector.extract_strided_slice %0 {offsets = [0, 0], sizes = [8, 1], strides = [1, 1]} : vector<8x2xf32> to vector<8x1xf32>
    %3 = vector.extract_strided_slice %1 {offsets = [0, 0], sizes = [1, 128], strides = [1, 1]} : vector<2x128xf32> to vector<1x128xf32>
    %4 = vector.broadcast %2 : vector<8x1xf32> to vector<8x128xf32>
    %5 = vector.broadcast %3 : vector<1x128xf32> to vector<8x128xf32>
    %6 = arith.mulf %4, %5 : vector<8x128xf32>
    %7 = vector.extract_strided_slice %0 {offsets = [0, 1], sizes = [8, 1], strides = [1, 1]} : vector<8x2xf32> to vector<8x1xf32>
    %8 = vector.extract_strided_slice %1 {offsets = [1, 0], sizes = [1, 128], strides = [1, 1]} : vector<2x128xf32> to vector<1x128xf32>
    %9 = vector.broadcast %7 : vector<8x1xf32> to vector<8x128xf32>
    %10 = vector.broadcast %8 : vector<1x128xf32> to vector<8x128xf32>
    %11 = arith.mulf %9, %10 : vector<8x128xf32>
    %12 = arith.addf %6, %11 : vector<8x128xf32>
    %c0_3 = arith.constant 0 : index
    %c0_4 = arith.constant 0 : index
    %13 = vector.load %arg3[%c0_3, %c0_4] : memref<1x128xf32, #tpu.memory_space<vmem>>, vector<1x128xf32>
    %14 = vector.broadcast %13 : vector<1x128xf32> to vector<8x128xf32>
    %15 = arith.addf %12, %14 : vector<8x128xf32>
    %cst = arith.constant 0.000000e+00 : f32
    %16 = vector.broadcast %cst : f32 to vector<8x128xf32>
    %17 = arith.maximumf %15, %16 : vector<8x128xf32>
    %c0_5 = arith.constant 0 : index
    %c0_6 = arith.constant 0 : index
    %18 = vector.load %arg4[%c0_5, %c0_6] : memref<128x128xf32, #tpu.memory_space<vmem>>, vector<128x128xf32>
    %cst_7 = arith.constant dense<0.000000e+00> : vector<8x128xf32>
    %19 = tpu.matmul %17, %18, %cst_7 {dimension_numbers = #tpu.dot_dimension_numbers<[1], [0], [0], [1], [0, 0, 1, 1], [], []>} : vector<8x128xf32>, vector<128x128xf32>, vector<8x128xf32> -> vector<8x128xf32>
    %c0_8 = arith.constant 0 : index
    %c0_9 = arith.constant 0 : index
    %20 = vector.load %arg5[%c0_8, %c0_9] : memref<1x128xf32, #tpu.memory_space<vmem>>, vector<1x128xf32>
    %21 = vector.broadcast %20 : vector<1x128xf32> to vector<8x128xf32>
    %22 = arith.addf %19, %21 : vector<8x128xf32>
    %cst_10 = arith.constant 0.000000e+00 : f32
    %23 = vector.broadcast %cst_10 : f32 to vector<8x128xf32>
    %24 = arith.maximumf %22, %23 : vector<8x128xf32>
    %c0_11 = arith.constant 0 : index
    %c0_12 = arith.constant 0 : index
    %25 = vector.load %arg6[%c0_11, %c0_12] : memref<128x8xf32, #tpu.memory_space<vmem>>, vector<128x8xf32>
    %cst_13 = arith.constant dense<0.000000e+00> : vector<8x8xf32>
    %26 = tpu.matmul %24, %25, %cst_13 {dimension_numbers = #tpu.dot_dimension_numbers<[1], [0], [0], [1], [0, 0, 1, 1], [], []>} : vector<8x128xf32>, vector<128x8xf32>, vector<8x8xf32> -> vector<8x8xf32>
    %c0_14 = arith.constant 0 : index
    %c0_15 = arith.constant 0 : index
    %27 = vector.load %arg7[%c0_14, %c0_15] : memref<1x8xf32, #tpu.memory_space<vmem>>, vector<1x8xf32>
    %28 = vector.broadcast %27 : vector<1x8xf32> to vector<8x8xf32>
    %29 = arith.addf %26, %28 : vector<8x8xf32>
    %cst_16 = arith.constant dense<0xFF800000> : vector<8xf32>
    %30 = vector.multi_reduction <maximumf>, %29, %cst_16 [1] : vector<8x8xf32> to vector<8xf32>
    %31 = vector.shape_cast %30 : vector<8xf32> to vector<8x1xf32>
    %32 = vector.broadcast %31 : vector<8x1xf32> to vector<8x8xf32>
    %33 = arith.subf %29, %32 : vector<8x8xf32>
    %34 = math.exp %33 : vector<8x8xf32>
    %cst_17 = arith.constant dense<0.000000e+00> : vector<8xf32>
    %35 = vector.multi_reduction <add>, %34, %cst_17 [1] : vector<8x8xf32> to vector<8xf32>
    %36 = vector.shape_cast %35 : vector<8xf32> to vector<8x1xf32>
    %37 = math.log %36 : vector<8x1xf32>
    %38 = vector.broadcast %37 : vector<8x1xf32> to vector<8x8xf32>
    %39 = arith.subf %33, %38 : vector<8x8xf32>
    %c0_18 = arith.constant 0 : index
    %c0_19 = arith.constant 0 : index
    %40 = vector.load %arg8[%c0_18, %c0_19] : memref<8x128xf32, #tpu.memory_space<vmem>>, vector<8x128xf32>
    tpu.vector_store %arg8[%c0_18, %c0_19], %24 {strides = array<i32>} : memref<8x128xf32, #tpu.memory_space<vmem>>, vector<8x128xf32>,
    %c0_20 = arith.constant 0 : index
    %c0_21 = arith.constant 0 : index
    %41 = vector.load %arg9[%c0_20, %c0_21] : memref<8x16xf32, #tpu.memory_space<vmem>>, vector<8x8xf32>
    tpu.vector_store %arg9[%c0_20, %c0_21], %29 {strides = array<i32>} : memref<8x16xf32, #tpu.memory_space<vmem>>, vector<8x8xf32>,
    %c0_22 = arith.constant 0 : index
    %c8 = arith.constant 8 : index
    %42 = vector.load %arg9[%c0_22, %c8] : memref<8x16xf32, #tpu.memory_space<vmem>>, vector<8x8xf32>
    tpu.vector_store %arg9[%c0_22, %c8], %39 {strides = array<i32>} : memref<8x16xf32, #tpu.memory_space<vmem>>, vector<8x8xf32>,
    return
  }
  func.func @transform_0(%arg0: i32) -> (i32, i32) {
    %c0_i32 = arith.constant 0 : i32
    %c0_i32_0 = arith.constant 0 : i32
    return %arg0, %c0_i32 : i32, i32
  }
  func.func @transform_1(%arg0: i32) -> (i32, i32) {
    %c0_i32 = arith.constant 0 : i32
    %c0_i32_0 = arith.constant 0 : i32
    %c0_i32_1 = arith.constant 0 : i32
    return %c0_i32, %c0_i32_0 : i32, i32
  }
  func.func @transform_2(%arg0: i32) -> (i32, i32) {
    %c0_i32 = arith.constant 0 : i32
    %c0_i32_0 = arith.constant 0 : i32
    %c0_i32_1 = arith.constant 0 : i32
    return %c0_i32, %c0_i32_0 : i32, i32
  }
  func.func @transform_3(%arg0: i32) -> (i32, i32) {
    %c0_i32 = arith.constant 0 : i32
    %c0_i32_0 = arith.constant 0 : i32
    %c0_i32_1 = arith.constant 0 : i32
    return %c0_i32, %c0_i32_0 : i32, i32
  }
  func.func @transform_4(%arg0: i32) -> (i32, i32) {
    %c0_i32 = arith.constant 0 : i32
    %c0_i32_0 = arith.constant 0 : i32
    %c0_i32_1 = arith.constant 0 : i32
    return %c0_i32, %c0_i32_0 : i32, i32
  }
  func.func @transform_5(%arg0: i32) -> (i32, i32) {
    %c0_i32 = arith.constant 0 : i32
    %c0_i32_0 = arith.constant 0 : i32
    %c0_i32_1 = arith.constant 0 : i32
    return %c0_i32, %c0_i32_0 : i32, i32
  }
  func.func @transform_6(%arg0: i32) -> (i32, i32) {
    %c0_i32 = arith.constant 0 : i32
    %c0_i32_0 = arith.constant 0 : i32
    %c0_i32_1 = arith.constant 0 : i32
    return %c0_i32, %c0_i32_0 : i32, i32
  }
  func.func @transform_7(%arg0: i32) -> (i32, i32) {
    %c0_i32 = arith.constant 0 : i32
    %c0_i32_0 = arith.constant 0 : i32
    return %arg0, %c0_i32 : i32, i32
  }
  func.func @transform_8(%arg0: i32) -> (i32, i32) {
    %c0_i32 = arith.constant 0 : i32
    %c0_i32_0 = arith.constant 0 : i32
    return %arg0, %c0_i32 : i32, i32
  }
}

</mosaic_0001>

<llo_original>
// kernel: tpu_custom_call.1
$region0: #{tpu_custom_call.1}
  #allocation0 [shape = 'u32[]', space=smem, size = 0x4, offset = 0x4, fixed_abs, tag = 'smem constant byte address 0x4 - core index']
  #allocation1 [shape = 'u32[144,128]{1,0:T(1,128)}', space=vmem, size = 0x12000, scoped, tag = 'internal scratch']
  %s0 = inlined_call_operand.vmem [shape: f32[8,2], index: 0, kind: input, shape index: {}]
  %s1 = inlined_call_operand.vmem [shape: f32[2,128], index: 1, kind: input, shape index: {}]
  %s2 = inlined_call_operand.vmem [shape: f32[1,128], index: 2, kind: input, shape index: {}]
  %s3 = inlined_call_operand.vmem [shape: f32[128,128], index: 3, kind: input, shape index: {}]
  %s4 = inlined_call_operand.vmem [shape: f32[1,128], index: 4, kind: input, shape index: {}]
  %s5 = inlined_call_operand.vmem [shape: f32[128,8], index: 5, kind: input, shape index: {}]
  %s6 = inlined_call_operand.vmem [shape: f32[1,8], index: 6, kind: input, shape index: {}]
  %s7 = inlined_call_operand.hbm [shape: f32[8,128], index: 7, kind: output, shape index: {0}]
  %s8 = inlined_call_operand.hbm [shape: f32[8,16], index: 8, kind: output, shape index: {1}]
  %9 = xla_tuple %s7, %s8
  %s10 = sld [smem:[#allocation0]]
  $region46: #{tpu_custom_call.1} parent=0
    _
  %s12 = ssub.s32 1, %s10
  %s13 = scalar_select 0, %s12, %s10
  $region1: #{tpu_custom_call.1} parent=0
    #allocation2 [shape = 'u8[4096]{0}', space=vmem, size = 0x1000, scoped, tag = 'output window, operand 0, single buffered']
    #allocation3 [shape = 's32[1]{0}', space=sflag, size = 0x4, scoped, tag = 'scoped memory for tpu_custom_call.1']
    #allocation4 [shape = 'u8[4096]{0}', space=vmem, size = 0x1000, scoped, tag = 'output window, operand 1, single buffered']
    #allocation5 [shape = 's32[1]{0}', space=sflag, size = 0x4, scoped, tag = 'scoped memory for tpu_custom_call.1']
    %14 = vsyncpa [#allocation3], 0
    %15 = vsyncpa [#allocation5], 0
    // Predicated region
    $region2: #{tpu_custom_call.1} parent=1 // pred_check
      _
    $region3: #{tpu_custom_call.1} parent=1 // pred_check_branch
      %17 = sbr.rel (0) target = $region5
    $region4: #{tpu_custom_call.1} parent=1 // pred_region
      _
    $region5: #{tpu_custom_call.1} parent=1 // pred_fallthru
      _
    // Predicated region
    $region6: #{tpu_custom_call.1} parent=1 // pred_check
      _
    $region7: #{tpu_custom_call.1} parent=1 // pred_check_branch
      %19 = sbr.rel (0) target = $region9
    $region8: #{tpu_custom_call.1} parent=1 // pred_region
      _
    $region9: #{tpu_custom_call.1} parent=1 // pred_fallthru
      _
    // Predicated region
    $region10: #{tpu_custom_call.1} parent=1 // pred_check
      _
    $region11: #{tpu_custom_call.1} parent=1 // pred_check_branch
      %21 = sbr.rel (0) target = $region13
    $region12: #{tpu_custom_call.1} parent=1 // pred_region
      _
    $region13: #{tpu_custom_call.1} parent=1 // pred_fallthru
      _
    // Predicated region
    $region14: #{tpu_custom_call.1} parent=1 // pred_check
      _
    $region15: #{tpu_custom_call.1} parent=1 // pred_check_branch
      %23 = sbr.rel (0) target = $region17
    $region16: #{tpu_custom_call.1} parent=1 // pred_region
      _
    $region17: #{tpu_custom_call.1} parent=1 // pred_fallthru
      _
    // Predicated region
    $region18: #{tpu_custom_call.1} parent=1 // pred_check
      _
    $region19: #{tpu_custom_call.1} parent=1 // pred_check_branch
      %25 = sbr.rel (0) target = $region21
    $region20: #{tpu_custom_call.1} parent=1 // pred_region
      _
    $region21: #{tpu_custom_call.1} parent=1 // pred_fallthru
      _
    // Predicated region
    $region22: #{tpu_custom_call.1} parent=1 // pred_check
      _
    $region23: #{tpu_custom_call.1} parent=1 // pred_check_branch
      %27 = sbr.rel (0) target = $region25
    $region24: #{tpu_custom_call.1} parent=1 // pred_region
      _
    $region25: #{tpu_custom_call.1} parent=1 // pred_fallthru
      _
    // Predicated region
    $region26: #{tpu_custom_call.1} parent=1 // pred_check
      _
    $region27: #{tpu_custom_call.1} parent=1 // pred_check_branch
      %29 = sbr.rel (0) target = $region29
    $region28: #{tpu_custom_call.1} parent=1 // pred_region
      _
    $region29: #{tpu_custom_call.1} parent=1 // pred_fallthru
      _
    %v30 = vld [vmem:[%s0] sm:$0xff]
    %v31 = vld [vmem:[%s1] sm:$0x3]
    %33 = vset.pattern.permute.xlu0 0
    %34 = vperm.xlu0 %33, %v30
    %v35 = vpop.permute.xlu0 %34
    %v37 = vlaneseq
    %v38 = vshrl.u32 %v37, 7
    %v39 = vsub.s32 0, %v38
    %v40 = vrot.slane %v31, %v39
    %v41 = vmul.f32 %v35, %v40
    %42 = vset.pattern.permute.xlu0 1
    %43 = vperm.xlu0 %42, %v30
    %v44 = vpop.permute.xlu0 %43
    %v46 = vlaneseq
    %v47 = vshrl.u32 %v46, 7
    %v48 = vsub.s32 1, %v47
    %v49 = vrot.slane %v31, %v48
    %v50 = vmul.f32 %v44, %v49
    %v51 = vadd.f32 %v41, %v50
    %v52 = vld [vmem:[%s2] sm:$0x1]
    %v54 = vlaneseq
    %v55 = vshrl.u32 %v54, 7
    %v56 = vsub.s32 0, %v55
    %v57 = vrot.slane %v52, %v56
    %v59 = vadd.f32 %v51, %v57
    %v60 = vmax.f32 %v59, 0.0
    %v61 = vld [vmem:[%s3] sm:$0xff]
    %v62 = vld [vmem:[%s3 + $0x8] sm:$0xff]
    %v63 = vld [vmem:[%s3 + $0x10] sm:$0xff]
    %v64 = vld [vmem:[%s3 + $0x18] sm:$0xff]
    %v65 = vld [vmem:[%s3 + $0x20] sm:$0xff]
    %v66 = vld [vmem:[%s3 + $0x28] sm:$0xff]
    %v67 = vld [vmem:[%s3 + $0x30] sm:$0xff]
    %v68 = vld [vmem:[%s3 + $0x38] sm:$0xff]
    %v69 = vld [vmem:[%s3 + $0x40] sm:$0xff]
    %v70 = vld [vmem:[%s3 + $0x48] sm:$0xff]
    %v71 = vld [vmem:[%s3 + $0x50] sm:$0xff]
    %v72 = vld [vmem:[%s3 + $0x58] sm:$0xff]
    %v73 = vld [vmem:[%s3 + $0x60] sm:$0xff]
    %v74 = vld [vmem:[%s3 + $0x68] sm:$0xff]
    %v75 = vld [vmem:[%s3 + $0x70] sm:$0xff]
    %v76 = vld [vmem:[%s3 + $0x78] sm:$0xff]
    %v77 = vld [vmem:[%s4] sm:$0x1]
    %v79 = vlaneseq
    %v80 = vshrl.u32 %v79, 7
    %v81 = vsub.s32 0, %v80
    %v82 = vrot.slane %v77, %v81
    %84 = vmatprep.subr.mxu0 0.0
    %85 = vmatpush1.msra.mxu0 %v61
    %86 = vmatprep.subr.mxu0 0.0
    %87 = vmatpush1.msra.mxu0 %v62
    %88 = vmatprep.subr.mxu0 0.0
    %89 = vmatpush1.msra.mxu0 %v63
    %90 = vmatprep.subr.mxu0 0.0
    %91 = vmatpush1.msra.mxu0 %v64
    %92 = vmatprep.subr.mxu0 0.0
    %93 = vmatpush1.msra.mxu0 %v65
    %94 = vmatprep.subr.mxu0 0.0
    %95 = vmatpush1.msra.mxu0 %v66
    %96 = vmatprep.subr.mxu0 0.0
    %97 = vmatpush1.msra.mxu0 %v67
    %98 = vmatprep.subr.mxu0 0.0
    %99 = vmatpush1.msra.mxu0 %v68
    %100 = vmatprep.subr.mxu0 0.0
    %101 = vmatpush1.msra.mxu0 %v69
    %102 = vmatprep.subr.mxu0 0.0
    %103 = vmatpush1.msra.mxu0 %v70
    %104 = vmatprep.subr.mxu0 0.0
    %105 = vmatpush1.msra.mxu0 %v71
    %106 = vmatprep.subr.mxu0 0.0
    %107 = vmatpush1.msra.mxu0 %v72
    %108 = vmatprep.subr.mxu0 0.0
    %109 = vmatpush1.msra.mxu0 %v73
    %110 = vmatprep.subr.mxu0 0.0
    %111 = vmatpush1.msra.mxu0 %v74
    %112 = vmatprep.subr.mxu0 0.0
    %113 = vmatpush1.msra.mxu0 %v75
    %114 = vmatprep.subr.mxu0 0.0
    %115 = vmatpush1.msra.mxu0 %v76
    %116 = vmatprep.subr.mxu0 0.0
    %117 = vmatpush1.msra.mxu0 0.0
    %118 = vmatprep.subr.mxu0 0.0
    %119 = vmatpush1.msra.mxu0 0.0
    %120 = vmatprep.subr.mxu0 0.0
    %121 = vmatpush1.msra.mxu0 0.0
    %122 = vmatprep.subr.mxu0 0.0
    %123 = vmatpush1.msra.mxu0 0.0
    %124 = vmatprep.subr.mxu0 0.0
    %125 = vmatpush1.msra.mxu0 0.0
    %126 = vmatprep.subr.mxu0 0.0
    %127 = vmatpush1.msra.mxu0 0.0
    %128 = vmatprep.subr.mxu0 0.0
    %129 = vmatpush1.msra.mxu0 0.0
    %130 = vmatprep.subr.mxu0 0.0
    %131 = vmatpush1.msra.mxu0 0.0
    %132 = vmatprep.subr.mxu0 0.0
    %133 = vmatpush1.msra.mxu0 0.0
    %134 = vmatprep.subr.mxu0 0.0
    %135 = vmatpush1.msra.mxu0 0.0
    %136 = vmatprep.subr.mxu0 0.0
    %137 = vmatpush1.msra.mxu0 0.0
    %138 = vmatprep.subr.mxu0 0.0
    %139 = vmatpush1.msra.mxu0 0.0
    %140 = vmatprep.subr.mxu0 0.0
    %141 = vmatpush1.msra.mxu0 0.0
    %142 = vmatprep.subr.mxu0 0.0
    %143 = vmatpush1.msra.mxu0 0.0
    %144 = vmatprep.subr.mxu0 0.0
    %145 = vmatpush1.msra.mxu0 0.0
    %146 = vmatprep.subr.mxu0 0.0
    %147 = vmatpush1.msra.mxu0 0.0
    %148 = vmatprep.mubr.f32.mxu0 0.0
    %149 = vmatmul.mubr.f32.gmra.mrb[0].mxu0 %v60
    %v150 = vpop.f32.mrb[0].mxu0
    %v151 = vadd.f32 %v82, %v150
    %v152 = vpop.f32.mrb[0].mxu0
    %153 = vdwg.mxu0
    %v154 = vmax.f32 %v151, 0.0
    %v155 = vld [vmem:[%s5] sm:$0xff]
    %v156 = vld [vmem:[%s5 + $0x8] sm:$0xff]
    %v157 = vld [vmem:[%s5 + $0x10] sm:$0xff]
    %v158 = vld [vmem:[%s5 + $0x18] sm:$0xff]
    %v159 = vld [vmem:[%s5 + $0x20] sm:$0xff]
    %v160 = vld [vmem:[%s5 + $0x28] sm:$0xff]
    %v161 = vld [vmem:[%s5 + $0x30] sm:$0xff]
    %v162 = vld [vmem:[%s5 + $0x38] sm:$0xff]
    %v163 = vld [vmem:[%s5 + $0x40] sm:$0xff]
    %v164 = vld [vmem:[%s5 + $0x48] sm:$0xff]
    %v165 = vld [vmem:[%s5 + $0x50] sm:$0xff]
    %v166 = vld [vmem:[%s5 + $0x58] sm:$0xff]
    %v167 = vld [vmem:[%s5 + $0x60] sm:$0xff]
    %v168 = vld [vmem:[%s5 + $0x68] sm:$0xff]
    %v169 = vld [vmem:[%s5 + $0x70] sm:$0xff]
    %v170 = vld [vmem:[%s5 + $0x78] sm:$0xff]
    %v171 = vld [vmem:[%s6] sm:$0x1]
    %v173 = vlaneseq
    %v174 = vshrl.u32 %v173, 7
    %v175 = vsub.s32 0, %v174
    %v176 = vrot.slane %v171, %v175
    %178 = vmatprep.subr.mxu0 0.0
    %179 = vmatpush1.msra.mxu0 %v155
    %180 = vmatprep.subr.mxu0 0.0
    %181 = vmatpush1.msra.mxu0 %v156
    %182 = vmatprep.subr.mxu0 0.0
    %183 = vmatpush1.msra.mxu0 %v157
    %184 = vmatprep.subr.mxu0 0.0
    %185 = vmatpush1.msra.mxu0 %v158
    %186 = vmatprep.subr.mxu0 0.0
    %187 = vmatpush1.msra.mxu0 %v159
    %188 = vmatprep.subr.mxu0 0.0
    %189 = vmatpush1.msra.mxu0 %v160
    %190 = vmatprep.subr.mxu0 0.0
    %191 = vmatpush1.msra.mxu0 %v161
    %192 = vmatprep.subr.mxu0 0.0
    %193 = vmatpush1.msra.mxu0 %v162
    %194 = vmatprep.subr.mxu0 0.0
    %195 = vmatpush1.msra.mxu0 %v163
    %196 = vmatprep.subr.mxu0 0.0
    %197 = vmatpush1.msra.mxu0 %v164
    %198 = vmatprep.subr.mxu0 0.0
    %199 = vmatpush1.msra.mxu0 %v165
    %200 = vmatprep.subr.mxu0 0.0
    %201 = vmatpush1.msra.mxu0 %v166
    %202 = vmatprep.subr.mxu0 0.0
    %203 = vmatpush1.msra.mxu0 %v167
    %204 = vmatprep.subr.mxu0 0.0
    %205 = vmatpush1.msra.mxu0 %v168
    %206 = vmatprep.subr.mxu0 0.0
    %207 = vmatpush1.msra.mxu0 %v169
    %208 = vmatprep.subr.mxu0 0.0
    %209 = vmatpush1.msra.mxu0 %v170
    %210 = vmatprep.subr.mxu0 0.0
    %211 = vmatpush1.msra.mxu0 0.0
    %212 = vmatprep.subr.mxu0 0.0
    %213 = vmatpush1.msra.mxu0 0.0
    %214 = vmatprep.subr.mxu0 0.0
    %215 = vmatpush1.msra.mxu0 0.0
    %216 = vmatprep.subr.mxu0 0.0
    %217 = vmatpush1.msra.mxu0 0.0
    %218 = vmatprep.subr.mxu0 0.0
    %219 = vmatpush1.msra.mxu0 0.0
    %220 = vmatprep.subr.mxu0 0.0
    %221 = vmatpush1.msra.mxu0 0.0
    %222 = vmatprep.subr.mxu0 0.0
    %223 = vmatpush1.msra.mxu0 0.0
    %224 = vmatprep.subr.mxu0 0.0
    %225 = vmatpush1.msra.mxu0 0.0
    %226 = vmatprep.subr.mxu0 0.0
    %227 = vmatpush1.msra.mxu0 0.0
    %228 = vmatprep.subr.mxu0 0.0
    %229 = vmatpush1.msra.mxu0 0.0
    %230 = vmatprep.subr.mxu0 0.0
    %231 = vmatpush1.msra.mxu0 0.0
    %232 = vmatprep.subr.mxu0 0.0
    %233 = vmatpush1.msra.mxu0 0.0
    %234 = vmatprep.subr.mxu0 0.0
    %235 = vmatpush1.msra.mxu0 0.0
    %236 = vmatprep.subr.mxu0 0.0
    %237 = vmatpush1.msra.mxu0 0.0
    %238 = vmatprep.subr.mxu0 0.0
    %239 = vmatpush1.msra.mxu0 0.0
    %240 = vmatprep.subr.mxu0 0.0
    %241 = vmatpush1.msra.mxu0 0.0
    %242 = vmatprep.mubr.f32.mxu0 0.0
    %243 = vmatmul.mubr.f32.gmra.mrb[0].mxu0 %v154
    %v244 = vpop.f32.mrb[0].mxu0
    %v245 = vadd.f32 %v176, %v244
    %v246 = vpop.f32.mrb[0].mxu0
    %247 = vdwg.mxu0
    %vm248 = vcmask 64512
    %v249 = vsel %vm248, %v245, -inf
    %250 = vmax.xlane.f32.xlu0 %v249
    %v251 = vpop.xlane.xlu0 %250
    %v252 = vsub.f32 %v245, %v251
    %v253 = vmul.f32 %v252, 1.442695
    %v254 = vpow.pop %v253
    %v255 = vsel %vm248, %v254, 0.0
    %256 = vadd.xlane.f32.xlu0 %v255
    %v257 = vpop.xlane.xlu0 %256
    %v258 = vlog2.pop %v257
    %v259 = vmul.f32 %v258, 0.6931472
    %v260 = vsub.f32 %v252, %v259
    %261 = vst [vmem:[#allocation2] sm:$0xff] %v154
    %262 = vst.msk [vmem:[#allocation4] sm:$0xff] %vm248, %v245
    %264 = vrot.lane.b32.xlu0 %v260, 8
    %v265 = vpop.permute.xlu0 %264
    %vm267 = vcmask 130112
    %268 = vst.msk [vmem:[#allocation4] sm:$0xff] %vm267, %v265
    // Predicated region
    $region30: #{tpu_custom_call.1} parent=1 // pred_check
      _
    $region31: #{tpu_custom_call.1} parent=1 // pred_check_branch
      %270 = sbr.rel (0) target = $region33
    $region32: #{tpu_custom_call.1} parent=1 // pred_region
      %s272 = ssub.s32 128, 128
      %273 = vsyncadd [#allocation3], %s272
      %s275 = sshll.u32 [#allocation2], 4
      %s276 = int_to_ptr.vmem [resolvable:$true] %s275
      %278 = dma.vmem_to_hbm [thread:$0]  %s276, 128, %s7, [#allocation3]
    $region33: #{tpu_custom_call.1} parent=1 // pred_fallthru
      _
    // Predicated region
    $region34: #{tpu_custom_call.1} parent=1 // pred_check
      _
    $region35: #{tpu_custom_call.1} parent=1 // pred_check_branch
      %280 = sbr.rel (0) target = $region37
    $region36: #{tpu_custom_call.1} parent=1 // pred_region
      %s282 = ssub.s32 128, 128
      %283 = vsyncadd [#allocation5], %s282
      %s285 = sshll.u32 [#allocation4], 4
      %s286 = int_to_ptr.vmem [resolvable:$true] %s285
      %288 = dma.vmem_to_hbm [thread:$0]  %s286, 128, %s8, [#allocation5]
    $region37: #{tpu_custom_call.1} parent=1 // pred_fallthru
      _
    // Predicated region
    $region38: #{tpu_custom_call.1} parent=1 // pred_check
      _
    $region39: #{tpu_custom_call.1} parent=1 // pred_check_branch
      %290 = sbr.rel (0) target = $region41
    $region40: #{tpu_custom_call.1} parent=1 // pred_region
      %291 = dma.done [#allocation3], 128
    $region41: #{tpu_custom_call.1} parent=1 // pred_fallthru
      _
    // Predicated region
    $region42: #{tpu_custom_call.1} parent=1 // pred_check
      _
    $region43: #{tpu_custom_call.1} parent=1 // pred_check_branch
      %293 = sbr.rel (0) target = $region45
    $region44: #{tpu_custom_call.1} parent=1 // pred_region
      %294 = dma.done [#allocation5], 128
    $region45: #{tpu_custom_call.1} parent=1 // pred_fallthru
      _
    %295 = vsyncpa [#allocation3], 1
    %296 = vsyncpa [#allocation5], 1

</llo_original>
